<compile_context>
chip_gen: v6e
topology: v6e:2x2x1
jax: 0.10.0
libtpu: 0.0.40
codegen_flags: <defaults>
</compile_context>

<pallas_src>
import jax
import jax.numpy as jnp
from jax.experimental import pallas as pl
from jax.experimental.pallas import tpu as pltpu

LANES = 128            # lane width of a vreg
MAX_TILE_ROWS = 8192   # (8192, 128) f32 block = 4 MiB


def _linear_kernel(w_ref, b_ref, x_ref, o_ref):
    # w_ref, b_ref: (1, 1) scalars in SMEM; x_ref/o_ref: (tile_r, 128) VMEM tiles.
    w = w_ref[0, 0]
    b = b_ref[0, 0]
    o_ref[...] = (x_ref[...].astype(jnp.float32) * w + b).astype(o_ref.dtype)


def _choose_tile_rows(rows: int) -> int:
    """Pick the row-block size for the (rows, 128) slab."""
    if rows <= 8:
        return rows                      # single full-extent block
    # >= 2 grid steps so v7x megacore can shard the "parallel" axis across
    # both TensorCores; blocks capped at 4 MiB.
    half = -(-rows // 2)                 # ceil(rows / 2)
    half = ((half + 7) // 8) * 8         # row-block must be a sublane multiple
    return min(MAX_TILE_ROWS, half)


def linear_regression_v2(x: jax.Array, weight: jax.Array, bias: jax.Array) -> jax.Array:
    """y = x @ weight.T + bias, with weight (1,1), bias (1,), x (..., 1) -> (..., 1)."""
    out_dtype = x.dtype
    flat = x.reshape(-1)                 # zero-copy
    B = flat.shape[0]

    # --- View as a lane-dense (rows, 128) slab; pad only if unaligned ------
    rows = -(-B // LANES)                # ceil(B / 128)
    padded = rows * LANES
    if padded != B:
        flat = jnp.pad(flat, (0, padded - B))
    x2d = flat.reshape(rows, LANES)

    # Parameters as (1,1) f32 scalars for SMEM.
    w_smem = weight.reshape(1, 1).astype(jnp.float32)
    b_smem = bias.reshape(1, 1).astype(jnp.float32)

    tile_r = _choose_tile_rows(rows)
    grid = (pl.cdiv(rows, tile_r),)      # ragged last block handled by Pallas

    out2d = pl.pallas_call(
        _linear_kernel,
        out_shape=jax.ShapeDtypeStruct((rows, LANES), out_dtype),
        grid_spec=pl.GridSpec(
            grid=grid,
            in_specs=[
                pl.BlockSpec(memory_space=pltpu.SMEM),            # weight scalar
                pl.BlockSpec(memory_space=pltpu.SMEM),            # bias scalar
                pl.BlockSpec((tile_r, LANES), lambda i: (i, 0)),  # x row-block
            ],
            out_specs=pl.BlockSpec((tile_r, LANES), lambda i: (i, 0)),
        ),
        compiler_params=pltpu.CompilerParams(
            dimension_semantics=("parallel",),        # megacore sharding on v7x
            vmem_limit_bytes=32 * 1024 * 1024,        # safe on v5e/v6e/v7x
        ),
    )(w_smem, b_smem, x2d)

    # Unpack back to the original shape; slice only when padding was added.
    out_flat = out2d.reshape(-1)
    if padded != B:
        out_flat = out_flat[:B]
    return out_flat.reshape(x.shape)


if __name__ == "__main__":
    key = jax.random.PRNGKey(0)
    kx, kw, kb, kx2, kx3 = jax.random.split(key, 5)

    # Deterministic parameters with nn.Linear(1, 1) shapes.
    weight = jax.random.normal(kw, (1, 1), dtype=jnp.float32)  # (out_features, in_features)
    bias = jax.random.normal(kb, (1,), dtype=jnp.float32)      # (out_features,)

    # Small input batch, shape (batch, in_features=1).
    x = jax.random.normal(kx, (8, 1), dtype=jnp.float32)
    y = linear_regression_v2(x, weight, bias)
    jax.block_until_ready(y)
    y_ref = x @ weight.T + bias
    assert y.shape == (8, 1)
    assert jnp.allclose(y, y_ref, atol=1e-6), (y, y_ref)

    # Unaligned batch exercises the padding + ragged-slice path.
    x2 = jax.random.normal(kx2, (300, 1), dtype=jnp.float32)
    y2 = linear_regression_v2(x2, weight, bias)
    jax.block_until_ready(y2)
    y2_ref = x2 @ weight.T + bias
    assert y2.shape == (300, 1)
    assert jnp.allclose(y2, y2_ref, atol=1e-6)

    # Lane-aligned batch exercises the zero-copy (no-pad) fast path.
    x3 = jax.random.normal(kx3, (256, 1), dtype=jnp.float32)
    y3 = linear_regression_v2(x3, weight, bias)
    jax.block_until_ready(y3)
    y3_ref = x3 @ weight.T + bias
    assert y3.shape == (256, 1)
    assert jnp.allclose(y3, y3_ref, atol=1e-6)

    print("KERNEL_OK")
</pallas_src>

<mosaic_0001>
module attributes {stable_mosaic.version = 11 : i64} {
  func.func @_linear_kernel(%arg0: i32, %arg1: memref<1x1xf32, #tpu.memory_space<smem>>, %arg2: memref<1x1xf32, #tpu.memory_space<smem>>, %arg3: memref<1x128xf32, #tpu.memory_space<vmem>>, %arg4: memref<1x128xf32, #tpu.memory_space<vmem>>) attributes {dimension_semantics = [#tpu.dimension_semantics<parallel>], iteration_bounds = array<i64: 1>, scalar_prefetch = 0 : i64, scratch_operands = 0 : i64, tpu.core_type = #tpu.core_type<tc>, window_params = [{transform_indices = @transform_0, window_bounds = array<i64: 1, 1>}, {transform_indices = @transform_1, window_bounds = array<i64: 1, 1>}, {transform_indices = @transform_2, window_bounds = array<i64: 1, 128>}, {transform_indices = @transform_3, window_bounds = array<i64: 1, 128>}]} {
    %c0 = arith.constant 0 : index
    %c0_0 = arith.constant 0 : index
    %0 = memref.load %arg1[%c0, %c0_0] : memref<1x1xf32, #tpu.memory_space<smem>>
    %c0_1 = arith.constant 0 : index
    %c0_2 = arith.constant 0 : index
    %1 = memref.load %arg2[%c0_1, %c0_2] : memref<1x1xf32, #tpu.memory_space<smem>>
    %c0_3 = arith.constant 0 : index
    %c0_4 = arith.constant 0 : index
    %2 = vector.load %arg3[%c0_3, %c0_4] : memref<1x128xf32, #tpu.memory_space<vmem>>, vector<1x128xf32>
    %3 = vector.broadcast %0 : f32 to vector<1x128xf32>
    %4 = arith.mulf %2, %3 : vector<1x128xf32>
    %5 = vector.broadcast %1 : f32 to vector<1x128xf32>
    %6 = arith.addf %4, %5 : vector<1x128xf32>
    %c0_5 = arith.constant 0 : index
    %c0_6 = arith.constant 0 : index
    %7 = vector.load %arg4[%c0_5, %c0_6] : memref<1x128xf32, #tpu.memory_space<vmem>>, vector<1x128xf32>
    tpu.vector_store %arg4[%c0_5, %c0_6], %6 {strides = array<i32>} : memref<1x128xf32, #tpu.memory_space<vmem>>, vector<1x128xf32>,
    return
  }
  func.func @transform_0(%arg0: i32) -> (i32, i32) {
    %c0_i32 = arith.constant 0 : i32
    %c0_i32_0 = arith.constant 0 : i32
    %c0_i32_1 = arith.constant 0 : i32
    return %c0_i32, %c0_i32_0 : i32, i32
  }
  func.func @transform_1(%arg0: i32) -> (i32, i32) {
    %c0_i32 = arith.constant 0 : i32
    %c0_i32_0 = arith.constant 0 : i32
    %c0_i32_1 = arith.constant 0 : i32
    return %c0_i32, %c0_i32_0 : i32, i32
  }
  func.func @transform_2(%arg0: i32) -> (i32, i32) {
    %c0_i32 = arith.constant 0 : i32
    %c0_i32_0 = arith.constant 0 : i32
    return %arg0, %c0_i32 : i32, i32
  }
  func.func @transform_3(%arg0: i32) -> (i32, i32) {
    %c0_i32 = arith.constant 0 : i32
    %c0_i32_0 = arith.constant 0 : i32
    return %arg0, %c0_i32 : i32, i32
  }
}

</mosaic_0001>

<llo_original>
// kernel: tpu_custom_call.1
$region0: #{tpu_custom_call.1}
  #allocation0 [shape = 'u32[]', space=smem, size = 0x4, offset = 0x4, fixed_abs, tag = 'smem constant byte address 0x4 - core index']
  #allocation1 [shape = 'u32[144,128]{1,0:T(1,128)}', space=vmem, size = 0x12000, scoped, tag = 'internal scratch']
  #allocation2 [shape = 'f32[1,1]{1,0:T(1,128)S(6)}', space=smem, size = 0x200, scoped, tag = 'scoped memory for tpu_custom_call.1']
  #allocation3 [shape = 'f32[1,1]{1,0:T(1,128)S(6)}', space=smem, size = 0x200, scoped, tag = 'scoped memory for tpu_custom_call.1']
  %s0 = inlined_call_operand.<no memory space> [shape: f32[1,1], index: 0, kind: input, shape index: {}]
  %s1 = inlined_call_operand.<no memory space> [shape: f32[1,1], index: 1, kind: input, shape index: {}]
  %s2 = inlined_call_operand.vmem [shape: f32[1,128], index: 2, kind: input, shape index: {}]
  %s3 = inlined_call_operand.hbm [shape: f32[1,128], index: 3, kind: output, shape index: {}]
  %s4 = sld [smem:[#allocation0]]
  $region22: #{tpu_custom_call.1} parent=0
    _
  %s6 = ssub.s32 1, %s4
  %s7 = scalar_select 0, %s6, %s4
  %8 = sst [smem:[#allocation2]] %s0
  %9 = sst [smem:[#allocation3]] %s1
  $region1: #{tpu_custom_call.1} parent=0
    #allocation4 [shape = 'u8[512]{0}', space=vmem, size = 0x400, scoped, tag = 'output window, operand 0, single buffered']
    #allocation5 [shape = 's32[1]{0}', space=sflag, size = 0x4, scoped, tag = 'scoped memory for tpu_custom_call.1']
    %10 = vsyncpa [#allocation5], 0
    // Predicated region
    $region2: #{tpu_custom_call.1} parent=1 // pred_check
      _
    $region3: #{tpu_custom_call.1} parent=1 // pred_check_branch
      %12 = sbr.rel (0) target = $region5
    $region4: #{tpu_custom_call.1} parent=1 // pred_region
      _
    $region5: #{tpu_custom_call.1} parent=1 // pred_fallthru
      _
    // Predicated region
    $region6: #{tpu_custom_call.1} parent=1 // pred_check
      _
    $region7: #{tpu_custom_call.1} parent=1 // pred_check_branch
      %14 = sbr.rel (0) target = $region9
    $region8: #{tpu_custom_call.1} parent=1 // pred_region
      _
    $region9: #{tpu_custom_call.1} parent=1 // pred_fallthru
      _
    // Predicated region
    $region10: #{tpu_custom_call.1} parent=1 // pred_check
      _
    $region11: #{tpu_custom_call.1} parent=1 // pred_check_branch
      %16 = sbr.rel (0) target = $region13
    $region12: #{tpu_custom_call.1} parent=1 // pred_region
      _
    $region13: #{tpu_custom_call.1} parent=1 // pred_fallthru
      _
    %s17 = sld [smem:[#allocation2]]
    %s18 = sld [smem:[#allocation3]]
    %v19 = vld [vmem:[%s2] sm:$0x1]
    %v20 = vstv %s17
    %v21 = vmul.f32 %v19, %v20
    %v22 = vstv %s18
    %v23 = vadd.f32 %v21, %v22
    %24 = vst [vmem:[#allocation4] sm:$0x1] %v23
    // Predicated region
    $region14: #{tpu_custom_call.1} parent=1 // pred_check
      _
    $region15: #{tpu_custom_call.1} parent=1 // pred_check_branch
      %26 = sbr.rel (0) target = $region17
    $region16: #{tpu_custom_call.1} parent=1 // pred_region
      %s28 = ssub.s32 16, 16
      %29 = vsyncadd [#allocation5], %s28
      %s31 = sshll.u32 [#allocation4], 4
      %s32 = int_to_ptr.vmem [resolvable:$true] %s31
      %34 = dma.vmem_to_hbm [thread:$0]  %s32, 16, %s3, [#allocation5]
    $region17: #{tpu_custom_call.1} parent=1 // pred_fallthru
      _
    // Predicated region
    $region18: #{tpu_custom_call.1} parent=1 // pred_check
      _
    $region19: #{tpu_custom_call.1} parent=1 // pred_check_branch
      %36 = sbr.rel (0) target = $region21
    $region20: #{tpu_custom_call.1} parent=1 // pred_region
      %37 = dma.done [#allocation5], 16
    $region21: #{tpu_custom_call.1} parent=1 // pred_fallthru
      _
    %38 = vsyncpa [#allocation5], 1

</llo_original>
